<compile_context>
chip_gen: v7x
topology: tpu7x:2x2x1
jax: 0.10.0
libtpu: 0.0.40
codegen_flags: <defaults>
</compile_context>

<pallas_src>
import jax
import jax.numpy as jnp
from jax.experimental import pallas as pl
from jax.experimental.pallas import tpu as pltpu


D_IN = 25
D_IN_PAD = 32   # 25 features + 1 bias column + 6 zero pad
HID = 128


def _round_up(n, m):
    return ((n + m - 1) // m) * m


def _leaky_relu(y, slope=0.01):
    return jnp.where(y > 0, y, slope * y)


def _bf16_epilogue_default():
    """bf16 VALU exists on v6e/v7x; keep the f32 epilogue elsewhere (v5e etc.)."""
    try:
        kind = jax.devices()[0].device_kind.lower()
    except Exception:
        return False
    return ("v6" in kind) or ("v7" in kind)


def _make_kernel(bf16_epilogue):
    """x_ref: (TILE_B, 32) bf16 (col 25 == 1.0 -> bias1 fold),
       w1_ref: (32, 128) bf16 (row 25 == bias1),
       b_ref:  (4, 128)  biases for layers 2..5 (bf16 or f32),
       wstack_ref: (4, 128, 128) bf16,
       o_ref:  (TILE_B, 128) out dtype."""

    def kernel(x_ref, w1_ref, b_ref, wstack_ref, o_ref):
        # Layer 1: (TILE_B, 32) @ (32, 128); bias folded into the MXU accumulate.
        y = jnp.dot(x_ref[...], w1_ref[...], preferred_element_type=jnp.float32)

        if bf16_epilogue:
            h = _leaky_relu(y.astype(jnp.bfloat16))            # bf16 VALU path
            for i in range(4):
                y = jnp.dot(h, wstack_ref[i],
                            preferred_element_type=jnp.float32)
                h = _leaky_relu(y.astype(jnp.bfloat16) + b_ref[pl.ds(i, 1), :])
            o_ref[...] = h.astype(o_ref.dtype)
        else:
            h = _leaky_relu(y)                                  # f32 VALU path
            for i in range(4):
                y = jnp.dot(h.astype(jnp.bfloat16), wstack_ref[i],
                            preferred_element_type=jnp.float32)
                h = _leaky_relu(y + b_ref[pl.ds(i, 1), :])
            o_ref[...] = h.astype(o_ref.dtype)

    return kernel


def vitalsign_feature(x, params, tile_b=2048, out_dtype=jnp.float32,
                      bf16_epilogue=None):
    """x: (B, 25) float32.
       params: list of 5 (w, b); w is (in, out) [transposed vs torch], b is (out,)."""
    B = x.shape[0]

    if bf16_epilogue is None:
        bf16_epilogue = _bf16_epilogue_default()

    # Clamp the tile for small batches (keep a multiple of 8 sublanes).
    tile_b = min(tile_b, _round_up(B, 8))
    b_pad = _round_up(B, tile_b)

    # Input prep (done once in the wrapper, not per tile in the kernel):
    #  - pad features 25 -> 32, set column 25 to 1.0 (bias-1 fold),
    #  - cast to bf16 (halves x HBM read bytes),
    #  - pad batch to a multiple of tile_b (padded rows are zero; col 25 stays 0
    #    there, so padded outputs are finite and simply sliced off).
    x_pad = jnp.zeros((b_pad, D_IN_PAD), jnp.bfloat16)
    x_pad = x_pad.at[:B, :D_IN].set(x.astype(jnp.bfloat16))
    x_pad = x_pad.at[:B, D_IN].set(1.0)

    # Parameter packing: w1 padded to (32,128) with bias1 in row 25; w2..w5
    # stacked (4,128,128); biases 2..5 stacked (4,128).
    (w1, b1) = params[0]
    w1_pad = jnp.zeros((D_IN_PAD, HID), jnp.float32)
    w1_pad = w1_pad.at[:D_IN, :].set(w1)
    w1_pad = w1_pad.at[D_IN, :].set(b1)
    w1_pad = w1_pad.astype(jnp.bfloat16)

    wstack = jnp.stack([w for (w, _) in params[1:]]).astype(jnp.bfloat16)
    b_dtype = jnp.bfloat16 if bf16_epilogue else jnp.float32
    bstack = jnp.stack([b for (_, b) in params[1:]]).astype(b_dtype)

    grid = (b_pad // tile_b,)

    out_itemsize = jnp.dtype(out_dtype).itemsize
    flops = 2 * b_pad * (D_IN_PAD * HID + 4 * HID * HID)
    bytes_accessed = (x_pad.size * 2 + w1_pad.size * 2 + wstack.size * 2
                      + bstack.size * bstack.dtype.itemsize
                      + b_pad * HID * out_itemsize)

    out = pl.pallas_call(
        _make_kernel(bf16_epilogue),
        out_shape=jax.ShapeDtypeStruct((b_pad, HID), out_dtype),
        grid=grid,
        in_specs=[
            pl.BlockSpec((tile_b, D_IN_PAD), lambda i: (i, 0)),   # x tile (bf16)
            pl.BlockSpec((D_IN_PAD, HID), lambda i: (0, 0)),      # w1 (resident)
            pl.BlockSpec((4, HID), lambda i: (0, 0)),             # biases 2..5 (resident)
            pl.BlockSpec((4, HID, HID), lambda i: (0, 0, 0)),     # w2..w5 (resident)
        ],
        out_specs=pl.BlockSpec((tile_b, HID), lambda i: (i, 0)),
        compiler_params=pltpu.CompilerParams(
            dimension_semantics=("parallel",),
            vmem_limit_bytes=48 * 1024 * 1024),
        cost_estimate=pl.CostEstimate(
            flops=flops, transcendentals=0, bytes_accessed=bytes_accessed),
    )(x_pad, w1_pad, bstack, wstack)

    return out[:B]


def init_params(key):
    """Synthetic init matching torch layer shapes:
       common1: Linear(25,128); common2..5: Linear(128,128).
       Weights stored transposed (in, out); biases (out,)."""
    dims = [(25, 128), (128, 128), (128, 128), (128, 128), (128, 128)]
    params = []
    for (d_in, d_out) in dims:
        kw, kb, key = jax.random.split(key, 3)
        bound = 1.0 / (d_in ** 0.5)            # torch default init scale
        w = jax.random.uniform(kw, (d_in, d_out), jnp.float32, -bound, bound)
        b = jax.random.uniform(kb, (d_out,), jnp.float32, -bound, bound)
        params.append((w, b))
    return params


def reference_forward_kernel_numerics(x, params, bf16_epilogue):
    """Pure-JAX reference matching the kernel's numerics (bf16 MXU operands,
       f32 accumulate, bias-1 fold, chosen epilogue precision)."""
    bf16 = jnp.bfloat16
    (w1, b1) = params[0]
    h = x.astype(bf16)
    y = jnp.dot(h, w1.astype(bf16), preferred_element_type=jnp.float32)
    y = y + b1.astype(bf16).astype(jnp.float32)          # folded bias (bf16-rounded)
    h = _leaky_relu(y.astype(bf16)) if bf16_epilogue else _leaky_relu(y)
    for (w, b) in params[1:]:
        y = jnp.dot(h.astype(bf16), w.astype(bf16),
                    preferred_element_type=jnp.float32)
        if bf16_epilogue:
            h = _leaky_relu(y.astype(bf16) + b.astype(bf16))
        else:
            h = _leaky_relu(y + b)
    return h.astype(jnp.float32)


def reference_forward_f32(x, params):
    """Pure f32 reference (original module semantics)."""
    h = x
    for (w, b) in params:
        y = h @ w + b
        h = jnp.where(y > 0, y, 0.01 * y)
    return h


if __name__ == "__main__":
    key = jax.random.PRNGKey(0)
    kx, kp = jax.random.split(key)

    params = init_params(kp)
    bf16_ep = _bf16_epilogue_default()

    # Small-shape check (single grid step).
    B = 8
    x = jax.random.normal(kx, (B, 25), dtype=jnp.float32)
    out = jax.block_until_ready(vitalsign_feature(x, params, bf16_epilogue=bf16_ep))
    assert out.shape == (B, 128)
    assert out.dtype == jnp.float32

    ref_k = reference_forward_kernel_numerics(x, params, bf16_ep)
    ref_f32 = reference_forward_f32(x, params)
    assert jnp.allclose(out, ref_k, atol=2e-3, rtol=2e-3), "mismatch vs kernel-numerics ref"
    assert jnp.allclose(out, ref_f32, atol=1e-1, rtol=5e-2), "mismatch vs f32 reference"

    # Ragged-batch / multi-step-grid check (exercises padding + pipelining path).
    B2 = 300
    x2 = jax.random.normal(jax.random.PRNGKey(1), (B2, 25), dtype=jnp.float32)
    out2 = jax.block_until_ready(
        vitalsign_feature(x2, params, tile_b=128, bf16_epilogue=bf16_ep))
    ref2 = reference_forward_kernel_numerics(x2, params, bf16_ep)
    assert out2.shape == (B2, 128)
    assert jnp.allclose(out2, ref2, atol=2e-3, rtol=2e-3), "mismatch on ragged batch"

    print("KERNEL_OK")
</pallas_src>

<mosaic_0001>
module attributes {stable_mosaic.version = 11 : i64} {
  func.func @kernel(%arg0: i32, %arg1: memref<8x32xbf16, #tpu.memory_space<vmem>>, %arg2: memref<32x128xbf16, #tpu.memory_space<vmem>>, %arg3: memref<4x128xf32, #tpu.memory_space<vmem>>, %arg4: memref<4x128x128xbf16, #tpu.memory_space<vmem>>, %arg5: memref<8x128xf32, #tpu.memory_space<vmem>>) attributes {dimension_semantics = [#tpu.dimension_semantics<parallel>], iteration_bounds = array<i64: 1>, scalar_prefetch = 0 : i64, scratch_operands = 0 : i64, tpu.core_type = #tpu.core_type<tc>, window_params = [{transform_indices = @transform_0, window_bounds = array<i64: 8, 32>}, {pipeline_mode = #tpu.pipeline_mode<synchronous>, transform_indices = @transform_1, window_bounds = array<i64: 32, 128>}, {pipeline_mode = #tpu.pipeline_mode<synchronous>, transform_indices = @transform_2, window_bounds = array<i64: 4, 128>}, {pipeline_mode = #tpu.pipeline_mode<synchronous>, transform_indices = @transform_3, window_bounds = array<i64: 4, 128, 128>}, {transform_indices = @transform_4, window_bounds = array<i64: 8, 128>}]} {
    %c0 = arith.constant 0 : index
    %c0_0 = arith.constant 0 : index
    %0 = vector.load %arg1[%c0, %c0_0] : memref<8x32xbf16, #tpu.memory_space<vmem>>, vector<8x32xbf16>
    %c0_1 = arith.constant 0 : index
    %c0_2 = arith.constant 0 : index
    %1 = vector.load %arg2[%c0_1, %c0_2] : memref<32x128xbf16, #tpu.memory_space<vmem>>, vector<32x128xbf16>
    %cst = arith.constant dense<0.000000e+00> : vector<8x128xf32>
    %2 = tpu.matmul %0, %1, %cst {dimension_numbers = #tpu.dot_dimension_numbers<[1], [0], [0], [1], [0, 0, 1, 1], [], []>} : vector<8x32xbf16>, vector<32x128xbf16>, vector<8x128xf32> -> vector<8x128xf32>
    %cst_3 = arith.constant 0.000000e+00 : f32
    %3 = vector.broadcast %cst_3 : f32 to vector<8x128xf32>
    %4 = arith.cmpf ogt, %2, %3 : vector<8x128xf32>
    %cst_4 = arith.constant 0.00999999977 : f32
    %5 = vector.broadcast %cst_4 : f32 to vector<8x128xf32>
    %6 = arith.mulf %5, %2 : vector<8x128xf32>
    %7 = arith.select %4, %2, %6 : vector<8x128xi1>, vector<8x128xf32>
    %8 = arith.truncf %7 : vector<8x128xf32> to vector<8x128xbf16>
    %c0_5 = arith.constant 0 : index
    %c0_6 = arith.constant 0 : index
    %c0_7 = arith.constant 0 : index
    %9 = vector.load %arg4[%c0_5, %c0_6, %c0_7] : memref<4x128x128xbf16, #tpu.memory_space<vmem>>, vector<1x128x128xbf16>
    %10 = vector.shape_cast %9 : vector<1x128x128xbf16> to vector<128x128xbf16>
    %cst_8 = arith.constant dense<0.000000e+00> : vector<8x128xf32>
    %11 = tpu.matmul %8, %10, %cst_8 {dimension_numbers = #tpu.dot_dimension_numbers<[1], [0], [0], [1], [0, 0, 1, 1], [], []>} : vector<8x128xbf16>, vector<128x128xbf16>, vector<8x128xf32> -> vector<8x128xf32>
    %c0_9 = arith.constant 0 : index
    %c0_10 = arith.constant 0 : index
    %12 = vector.load %arg3[%c0_9, %c0_10] : memref<4x128xf32, #tpu.memory_space<vmem>>, vector<1x128xf32>
    %13 = vector.broadcast %12 : vector<1x128xf32> to vector<8x128xf32>
    %14 = arith.addf %11, %13 : vector<8x128xf32>
    %cst_11 = arith.constant 0.000000e+00 : f32
    %15 = vector.broadcast %cst_11 : f32 to vector<8x128xf32>
    %16 = arith.cmpf ogt, %14, %15 : vector<8x128xf32>
    %cst_12 = arith.constant 0.00999999977 : f32
    %17 = vector.broadcast %cst_12 : f32 to vector<8x128xf32>
    %18 = arith.mulf %17, %14 : vector<8x128xf32>
    %19 = arith.select %16, %14, %18 : vector<8x128xi1>, vector<8x128xf32>
    %20 = arith.truncf %19 : vector<8x128xf32> to vector<8x128xbf16>
    %c1 = arith.constant 1 : index
    %c0_13 = arith.constant 0 : index
    %c0_14 = arith.constant 0 : index
    %21 = vector.load %arg4[%c1, %c0_13, %c0_14] : memref<4x128x128xbf16, #tpu.memory_space<vmem>>, vector<1x128x128xbf16>
    %22 = vector.shape_cast %21 : vector<1x128x128xbf16> to vector<128x128xbf16>
    %cst_15 = arith.constant dense<0.000000e+00> : vector<8x128xf32>
    %23 = tpu.matmul %20, %22, %cst_15 {dimension_numbers = #tpu.dot_dimension_numbers<[1], [0], [0], [1], [0, 0, 1, 1], [], []>} : vector<8x128xbf16>, vector<128x128xbf16>, vector<8x128xf32> -> vector<8x128xf32>
    %c1_16 = arith.constant 1 : index
    %c0_17 = arith.constant 0 : index
    %24 = vector.load %arg3[%c1_16, %c0_17] : memref<4x128xf32, #tpu.memory_space<vmem>>, vector<1x128xf32>
    %25 = vector.broadcast %24 : vector<1x128xf32> to vector<8x128xf32>
    %26 = arith.addf %23, %25 : vector<8x128xf32>
    %cst_18 = arith.constant 0.000000e+00 : f32
    %27 = vector.broadcast %cst_18 : f32 to vector<8x128xf32>
    %28 = arith.cmpf ogt, %26, %27 : vector<8x128xf32>
    %cst_19 = arith.constant 0.00999999977 : f32
    %29 = vector.broadcast %cst_19 : f32 to vector<8x128xf32>
    %30 = arith.mulf %29, %26 : vector<8x128xf32>
    %31 = arith.select %28, %26, %30 : vector<8x128xi1>, vector<8x128xf32>
    %32 = arith.truncf %31 : vector<8x128xf32> to vector<8x128xbf16>
    %c2 = arith.constant 2 : index
    %c0_20 = arith.constant 0 : index
    %c0_21 = arith.constant 0 : index
    %33 = vector.load %arg4[%c2, %c0_20, %c0_21] : memref<4x128x128xbf16, #tpu.memory_space<vmem>>, vector<1x128x128xbf16>
    %34 = vector.shape_cast %33 : vector<1x128x128xbf16> to vector<128x128xbf16>
    %cst_22 = arith.constant dense<0.000000e+00> : vector<8x128xf32>
    %35 = tpu.matmul %32, %34, %cst_22 {dimension_numbers = #tpu.dot_dimension_numbers<[1], [0], [0], [1], [0, 0, 1, 1], [], []>} : vector<8x128xbf16>, vector<128x128xbf16>, vector<8x128xf32> -> vector<8x128xf32>
    %c2_23 = arith.constant 2 : index
    %c0_24 = arith.constant 0 : index
    %36 = vector.load %arg3[%c2_23, %c0_24] : memref<4x128xf32, #tpu.memory_space<vmem>>, vector<1x128xf32>
    %37 = vector.broadcast %36 : vector<1x128xf32> to vector<8x128xf32>
    %38 = arith.addf %35, %37 : vector<8x128xf32>
    %cst_25 = arith.constant 0.000000e+00 : f32
    %39 = vector.broadcast %cst_25 : f32 to vector<8x128xf32>
    %40 = arith.cmpf ogt, %38, %39 : vector<8x128xf32>
    %cst_26 = arith.constant 0.00999999977 : f32
    %41 = vector.broadcast %cst_26 : f32 to vector<8x128xf32>
    %42 = arith.mulf %41, %38 : vector<8x128xf32>
    %43 = arith.select %40, %38, %42 : vector<8x128xi1>, vector<8x128xf32>
    %44 = arith.truncf %43 : vector<8x128xf32> to vector<8x128xbf16>
    %c3 = arith.constant 3 : index
    %c0_27 = arith.constant 0 : index
    %c0_28 = arith.constant 0 : index
    %45 = vector.load %arg4[%c3, %c0_27, %c0_28] : memref<4x128x128xbf16, #tpu.memory_space<vmem>>, vector<1x128x128xbf16>
    %46 = vector.shape_cast %45 : vector<1x128x128xbf16> to vector<128x128xbf16>
    %cst_29 = arith.constant dense<0.000000e+00> : vector<8x128xf32>
    %47 = tpu.matmul %44, %46, %cst_29 {dimension_numbers = #tpu.dot_dimension_numbers<[1], [0], [0], [1], [0, 0, 1, 1], [], []>} : vector<8x128xbf16>, vector<128x128xbf16>, vector<8x128xf32> -> vector<8x128xf32>
    %c3_30 = arith.constant 3 : index
    %c0_31 = arith.constant 0 : index
    %48 = vector.load %arg3[%c3_30, %c0_31] : memref<4x128xf32, #tpu.memory_space<vmem>>, vector<1x128xf32>
    %49 = vector.broadcast %48 : vector<1x128xf32> to vector<8x128xf32>
    %50 = arith.addf %47, %49 : vector<8x128xf32>
    %cst_32 = arith.constant 0.000000e+00 : f32
    %51 = vector.broadcast %cst_32 : f32 to vector<8x128xf32>
    %52 = arith.cmpf ogt, %50, %51 : vector<8x128xf32>
    %cst_33 = arith.constant 0.00999999977 : f32
    %53 = vector.broadcast %cst_33 : f32 to vector<8x128xf32>
    %54 = arith.mulf %53, %50 : vector<8x128xf32>
    %55 = arith.select %52, %50, %54 : vector<8x128xi1>, vector<8x128xf32>
    %c0_34 = arith.constant 0 : index
    %c0_35 = arith.constant 0 : index
    %56 = vector.load %arg5[%c0_34, %c0_35] : memref<8x128xf32, #tpu.memory_space<vmem>>, vector<8x128xf32>
    tpu.vector_store %arg5[%c0_34, %c0_35], %55 {strides = array<i32>} : memref<8x128xf32, #tpu.memory_space<vmem>>, vector<8x128xf32>,
    return
  }
  func.func @transform_0(%arg0: i32) -> (i32, i32) {
    %c0_i32 = arith.constant 0 : i32
    %c0_i32_0 = arith.constant 0 : i32
    return %arg0, %c0_i32 : i32, i32
  }
  func.func @transform_1(%arg0: i32) -> (i32, i32) {
    %c0_i32 = arith.constant 0 : i32
    %c0_i32_0 = arith.constant 0 : i32
    %c0_i32_1 = arith.constant 0 : i32
    return %c0_i32, %c0_i32_0 : i32, i32
  }
  func.func @transform_2(%arg0: i32) -> (i32, i32) {
    %c0_i32 = arith.constant 0 : i32
    %c0_i32_0 = arith.constant 0 : i32
    %c0_i32_1 = arith.constant 0 : i32
    return %c0_i32, %c0_i32_0 : i32, i32
  }
  func.func @transform_3(%arg0: i32) -> (i32, i32, i32) {
    %c0_i32 = arith.constant 0 : i32
    %c0_i32_0 = arith.constant 0 : i32
    %c0_i32_1 = arith.constant 0 : i32
    %c0_i32_2 = arith.constant 0 : i32
    return %c0_i32, %c0_i32_0, %c0_i32_1 : i32, i32, i32
  }
  func.func @transform_4(%arg0: i32) -> (i32, i32) {
    %c0_i32 = arith.constant 0 : i32
    %c0_i32_0 = arith.constant 0 : i32
    return %arg0, %c0_i32 : i32, i32
  }
}

</mosaic_0001>

<llo_original>
// kernel: tpu_custom_call.1
$region0: #{tpu_custom_call.1}
  #allocation0 [shape = 'u32[]', space=smem, size = 0x4, offset = 0x4, fixed_abs, tag = 'smem constant byte address 0x4 - core index']
  #allocation1 [shape = 'u32[144,128]{1,0:T(1,128)}', space=vmem, size = 0x12000, scoped, tag = 'internal scratch']
  %s0 = inlined_call_operand.hbm [shape: bf16[8,32], index: 0, kind: input, shape index: {}]
  %s1 = inlined_call_operand.hbm [shape: bf16[32,128], index: 1, kind: input, shape index: {}]
  %s2 = inlined_call_operand.vmem [shape: f32[4,128], index: 2, kind: input, shape index: {}]
  %s3 = inlined_call_operand.hbm [shape: bf16[4,128,128], index: 3, kind: input, shape index: {}]
  %s4 = inlined_call_operand.hbm [shape: f32[8,128], index: 4, kind: output, shape index: {}]
  %s5 = sld [smem:[#allocation0]]
  $region38: #{tpu_custom_call.1} parent=0
    _
  %s7 = ssub.s32 1, %s5
  %s8 = scalar_select 0, %s7, %s5
  $region1: #{tpu_custom_call.1} parent=0
    #allocation2 [shape = 'u8[2048]{0}', space=vmem, size = 0x800, scoped, tag = 'input window, operand 0, single buffered']
    #allocation3 [shape = 's32[1]{0}', space=sflag, size = 0x4, scoped, tag = 'scoped memory for tpu_custom_call.1']
    #allocation4 [shape = 's32[1]{0}', space=sflag, size = 0x4, scoped, tag = 'scoped memory for tpu_custom_call.1']
    #allocation5 [shape = 'u8[8192]{0}', space=vmem, size = 0x2000, scoped, tag = 'input window, operand 1, single buffered']
    #allocation6 [shape = 's32[1]{0}', space=sflag, size = 0x4, scoped, tag = 'scoped memory for tpu_custom_call.1']
    #allocation7 [shape = 'u8[131072]{0}', space=vmem, size = 0x20000, scoped, tag = 'input window, operand 3, single buffered']
    #allocation8 [shape = 'u8[4096]{0}', space=vmem, size = 0x1000, scoped, tag = 'output window, operand 0, single buffered']
    %9 = vsyncpa [#allocation3], 0
    %10 = vsyncpa [#allocation6], 0
    %11 = vsyncpa [#allocation4], 0
    // Predicated region
    $region2: #{tpu_custom_call.1} parent=1 // pred_check
      _
    $region3: #{tpu_custom_call.1} parent=1 // pred_check_branch
      %13 = sbr.rel (0) target = $region5
    $region4: #{tpu_custom_call.1} parent=1 // pred_region
      %s15 = ssub.s32 64, 64
      %16 = vsyncadd [#allocation3], %s15
      %s18 = sshll.u32 [#allocation2], 4
      %s19 = int_to_ptr.vmem [resolvable:$true] %s18
      %21 = dma.hbm_to_vmem [thread:$0]  %s0, 64, %s19, [#allocation3]
    $region5: #{tpu_custom_call.1} parent=1 // pred_fallthru
      _
    // Predicated region
    $region6: #{tpu_custom_call.1} parent=1 // pred_check
      _
    $region7: #{tpu_custom_call.1} parent=1 // pred_check_branch
      %23 = sbr.rel (0) target = $region9
    $region8: #{tpu_custom_call.1} parent=1 // pred_region
      %s25 = ssub.s32 256, 256
      %26 = vsyncadd [#allocation6], %s25
      %s27 = sshll.u32 [#allocation5], 4
      %s28 = int_to_ptr.vmem [resolvable:$true] %s27
      %33 = dma.hbm_to_vmem [thread:$0]  %s1, 256, %s28, [#allocation6], 64, 64, 4
    $region9: #{tpu_custom_call.1} parent=1 // pred_fallthru
      _
    // Predicated region
    $region10: #{tpu_custom_call.1} parent=1 // pred_check
      _
    $region11: #{tpu_custom_call.1} parent=1 // pred_check_branch
      %35 = sbr.rel (0) target = $region13
    $region12: #{tpu_custom_call.1} parent=1 // pred_region
      _
    $region13: #{tpu_custom_call.1} parent=1 // pred_fallthru
      _
    // Predicated region
    $region14: #{tpu_custom_call.1} parent=1 // pred_check
      _
    $region15: #{tpu_custom_call.1} parent=1 // pred_check_branch
      %37 = sbr.rel (0) target = $region17
    $region16: #{tpu_custom_call.1} parent=1 // pred_region
      %s39 = ssub.s32 4096, 4096
      %40 = vsyncadd [#allocation6], %s39
      %s41 = sshll.u32 [#allocation7], 4
      %s42 = int_to_ptr.vmem [resolvable:$true] %s41
      %47 = dma.hbm_to_vmem [thread:$0]  %s3, 4096, %s42, [#allocation6], 64, 64, 4
    $region17: #{tpu_custom_call.1} parent=1 // pred_fallthru
      _
    // Predicated region
    $region18: #{tpu_custom_call.1} parent=1 // pred_check
      _
    $region19: #{tpu_custom_call.1} parent=1 // pred_check_branch
      %49 = sbr.rel (0) target = $region21
    $region20: #{tpu_custom_call.1} parent=1 // pred_region
      %50 = dma.done [#allocation3], 64
    $region21: #{tpu_custom_call.1} parent=1 // pred_fallthru
      _
    // Predicated region
    $region22: #{tpu_custom_call.1} parent=1 // pred_check
      _
    $region23: #{tpu_custom_call.1} parent=1 // pred_check_branch
      %52 = sbr.rel (0) target = $region25
    $region24: #{tpu_custom_call.1} parent=1 // pred_region
      %53 = dma.done [#allocation6], 256
    $region25: #{tpu_custom_call.1} parent=1 // pred_fallthru
      _
    // Predicated region
    $region26: #{tpu_custom_call.1} parent=1 // pred_check
      _
    $region27: #{tpu_custom_call.1} parent=1 // pred_check_branch
      %55 = sbr.rel (0) target = $region29
    $region28: #{tpu_custom_call.1} parent=1 // pred_region
      %56 = dma.done [#allocation6], 4096
    $region29: #{tpu_custom_call.1} parent=1 // pred_fallthru
      _
    %v58 = vld [vmem:[#allocation2] sm:$0xf]
    %v59 = vld [vmem:[#allocation5] sm:$0xf]
    %v60 = vld [vmem:[#allocation5 + $0x4] sm:$0xf]
    %v61 = vld [vmem:[#allocation5 + $0x8] sm:$0xf]
    %v62 = vld [vmem:[#allocation5 + $0xc] sm:$0xf]
    %v67 = vunpack.c.l.b16 %v59
    %v68 = vunpack.c.l.b16 %v60
    %v69 = vunpack.c.l.b16 %v61
    %v70 = vunpack.c.l.b16 %v62
    %v71 = vpack.c.b16 %v68, %v67
    %v72 = vpack.c.b16 %v70, %v69
    %vm75 = vcmask 261120
    %v77 = vsel %vm75, %v58, 0
    %79 = vmatprep.subr.bf16.mxu0 0
    %80 = vmatpush1.bf16.msra.mxu0 %v71
    %81 = vmatprep.subr.bf16.mxu0 0
    %82 = vmatpush1.bf16.msra.mxu0 %v72
    %83 = vmatprep.subr.bf16.mxu0 0
    %84 = vmatpush1.bf16.msra.mxu0 0
    %85 = vmatprep.subr.bf16.mxu0 0
    %86 = vmatpush1.bf16.msra.mxu0 0
    %87 = vmatprep.subr.bf16.mxu0 0
    %88 = vmatpush1.bf16.msra.mxu0 0
    %89 = vmatprep.subr.bf16.mxu0 0
    %90 = vmatpush1.bf16.msra.mxu0 0
    %91 = vmatprep.subr.bf16.mxu0 0
    %92 = vmatpush1.bf16.msra.mxu0 0
    %93 = vmatprep.subr.bf16.mxu0 0
    %94 = vmatpush1.bf16.msra.mxu0 0
    %95 = vmatprep.subr.bf16.mxu0 0
    %96 = vmatpush1.bf16.msra.mxu0 0
    %97 = vmatprep.subr.bf16.mxu0 0
    %98 = vmatpush1.bf16.msra.mxu0 0
    %99 = vmatprep.subr.bf16.mxu0 0
    %100 = vmatpush1.bf16.msra.mxu0 0
    %101 = vmatprep.subr.bf16.mxu0 0
    %102 = vmatpush1.bf16.msra.mxu0 0
    %103 = vmatprep.subr.bf16.mxu0 0
    %104 = vmatpush1.bf16.msra.mxu0 0
    %105 = vmatprep.subr.bf16.mxu0 0
    %106 = vmatpush1.bf16.msra.mxu0 0
    %107 = vmatprep.subr.bf16.mxu0 0
    %108 = vmatpush1.bf16.msra.mxu0 0
    %109 = vmatprep.subr.bf16.mxu0 0
    %110 = vmatpush1.bf16.msra.mxu0 0
    %111 = vmatprep.mubr.bf16.mxu0 0
    %112 = vmatmul.mubr.bf16.gmra.mrb[0].mxu0 %v77
    %v113 = vpop.f32.mrb[0].mxu0
    %v114 = vadd.f32 0.0, %v113
    %v115 = vpop.f32.mrb[0].mxu0
    %v116 = vpop.f32.mrb[0].mxu0
    %v117 = vpop.f32.mrb[0].mxu0
    %118 = vdwg.mxu0
    %vm119 = vcmp.gt.f32.partialorder %v114, 0.0
    %v120 = vmul.f32 %v114, 0.01
    %v121 = vsel %vm119, %v114, %v120
    %v122 = vpack.c.bf16 %v121, %v121
    %v123 = vld [vmem:[#allocation7] sm:$0xf]
    %v124 = vld [vmem:[#allocation7 + $0x4] sm:$0xf]
    %v125 = vld [vmem:[#allocation7 + $0x8] sm:$0xf]
    %v126 = vld [vmem:[#allocation7 + $0xc] sm:$0xf]
    %v127 = vld [vmem:[#allocation7 + $0x10] sm:$0xf]
    %v128 = vld [vmem:[#allocation7 + $0x14] sm:$0xf]
    %v129 = vld [vmem:[#allocation7 + $0x18] sm:$0xf]
    %v130 = vld [vmem:[#allocation7 + $0x1c] sm:$0xf]
    %v131 = vld [vmem:[#allocation7 + $0x20] sm:$0xf]
    %v132 = vld [vmem:[#allocation7 + $0x24] sm:$0xf]
    %v133 = vld [vmem:[#allocation7 + $0x28] sm:$0xf]
    %v134 = vld [vmem:[#allocation7 + $0x2c] sm:$0xf]
    %v135 = vld [vmem:[#allocation7 + $0x30] sm:$0xf]
    %v136 = vld [vmem:[#allocation7 + $0x34] sm:$0xf]
    %v137 = vld [vmem:[#allocation7 + $0x38] sm:$0xf]
    %v138 = vld [vmem:[#allocation7 + $0x3c] sm:$0xf]
    %v139 = vld [vmem:[%s2] sm:$0x1]
    %v140 = vlaneseq
    %v141 = vshrl.u32 %v140, 7
    %v142 = vsub.s32 0, %v141
    %v143 = vrot.slane %v139, %v142
    %v160 = vunpack.c.l.b16 %v123
    %v161 = vunpack.c.l.b16 %v124
    %v162 = vunpack.c.l.b16 %v125
    %v163 = vunpack.c.l.b16 %v126
    %v164 = vunpack.c.l.b16 %v127
    %v165 = vunpack.c.l.b16 %v128
    %v166 = vunpack.c.l.b16 %v129
    %v167 = vunpack.c.l.b16 %v130
    %v168 = vunpack.c.l.b16 %v131
    %v169 = vunpack.c.l.b16 %v132
    %v170 = vunpack.c.l.b16 %v133
    %v171 = vunpack.c.l.b16 %v134
    %v172 = vunpack.c.l.b16 %v135
    %v173 = vunpack.c.l.b16 %v136
    %v174 = vunpack.c.l.b16 %v137
    %v175 = vunpack.c.l.b16 %v138
    %v176 = vpack.c.b16 %v161, %v160
    %v177 = vpack.c.b16 %v163, %v162
    %v178 = vpack.c.b16 %v165, %v164
    %v179 = vpack.c.b16 %v167, %v166
    %v180 = vpack.c.b16 %v169, %v168
    %v181 = vpack.c.b16 %v171, %v170
    %v182 = vpack.c.b16 %v173, %v172
    %v183 = vpack.c.b16 %v175, %v174
    %192 = vmatprep.subr.bf16.mxu0 0
    %193 = vmatpush1.bf16.msra.mxu0 %v176
    %194 = vmatprep.subr.bf16.mxu0 0
    %195 = vmatpush1.bf16.msra.mxu0 %v177
    %196 = vmatprep.subr.bf16.mxu0 0
    %197 = vmatpush1.bf16.msra.mxu0 %v178
    %198 = vmatprep.subr.bf16.mxu0 0
    %199 = vmatpush1.bf16.msra.mxu0 %v179
    %200 = vmatprep.subr.bf16.mxu0 0
    %201 = vmatpush1.bf16.msra.mxu0 %v180
    %202 = vmatprep.subr.bf16.mxu0 0
    %203 = vmatpush1.bf16.msra.mxu0 %v181
    %204 = vmatprep.subr.bf16.mxu0 0
    %205 = vmatpush1.bf16.msra.mxu0 %v182
    %206 = vmatprep.subr.bf16.mxu0 0
    %207 = vmatpush1.bf16.msra.mxu0 %v183
    %208 = vmatprep.subr.bf16.mxu0 0
    %209 = vmatpush1.bf16.msra.mxu0 0
    %210 = vmatprep.subr.bf16.mxu0 0
    %211 = vmatpush1.bf16.msra.mxu0 0
    %212 = vmatprep.subr.bf16.mxu0 0
    %213 = vmatpush1.bf16.msra.mxu0 0
    %214 = vmatprep.subr.bf16.mxu0 0
    %215 = vmatpush1.bf16.msra.mxu0 0
    %216 = vmatprep.subr.bf16.mxu0 0
    %217 = vmatpush1.bf16.msra.mxu0 0
    %218 = vmatprep.subr.bf16.mxu0 0
    %219 = vmatpush1.bf16.msra.mxu0 0
    %220 = vmatprep.subr.bf16.mxu0 0
    %221 = vmatpush1.bf16.msra.mxu0 0
    %222 = vmatprep.subr.bf16.mxu0 0
    %223 = vmatpush1.bf16.msra.mxu0 0
    %224 = vmatprep.mubr.bf16.mxu0 0
    %225 = vmatmul.mubr.bf16.gmra.mrb[0].mxu0 %v122
    %v226 = vpop.f32.mrb[0].mxu0
    %v227 = vadd.f32 %v143, %v226
    %v228 = vpop.f32.mrb[0].mxu0
    %v229 = vpop.f32.mrb[0].mxu0
    %v230 = vpop.f32.mrb[0].mxu0
    %231 = vdwg.mxu0
    %vm232 = vcmp.gt.f32.partialorder %v227, 0.0
    %v233 = vmul.f32 %v227, 0.01
    %v234 = vsel %vm232, %v227, %v233
    %v235 = vpack.c.bf16 %v234, %v234
    %s236 = scalar_lea.vmem [#allocation7], 64
    %v237 = vld [vmem:[%s236] sm:$0xf]
    %v238 = vld [vmem:[%s236 + $0x4] sm:$0xf]
    %v239 = vld [vmem:[%s236 + $0x8] sm:$0xf]
    %v240 = vld [vmem:[%s236 + $0xc] sm:$0xf]
    %v241 = vld [vmem:[%s236 + $0x10] sm:$0xf]
    %v242 = vld [vmem:[%s236 + $0x14] sm:$0xf]
    %v243 = vld [vmem:[%s236 + $0x18] sm:$0xf]
    %v244 = vld [vmem:[%s236 + $0x1c] sm:$0xf]
    %v245 = vld [vmem:[%s236 + $0x20] sm:$0xf]
    %v246 = vld [vmem:[%s236 + $0x24] sm:$0xf]
    %v247 = vld [vmem:[%s236 + $0x28] sm:$0xf]
    %v248 = vld [vmem:[%s236 + $0x2c] sm:$0xf]
    %v249 = vld [vmem:[%s236 + $0x30] sm:$0xf]
    %v250 = vld [vmem:[%s236 + $0x34] sm:$0xf]
    %v251 = vld [vmem:[%s236 + $0x38] sm:$0xf]
    %v252 = vld [vmem:[%s236 + $0x3c] sm:$0xf]
    %v253 = vld [vmem:[%s2 + $0x1] sm:$0x1]
    %v254 = vlaneseq
    %v255 = vshrl.u32 %v254, 7
    %v256 = vsub.s32 0, %v255
    %v257 = vrot.slane %v253, %v256
    %v274 = vunpack.c.l.b16 %v237
    %v275 = vunpack.c.l.b16 %v238
    %v276 = vunpack.c.l.b16 %v239
    %v277 = vunpack.c.l.b16 %v240
    %v278 = vunpack.c.l.b16 %v241
    %v279 = vunpack.c.l.b16 %v242
    %v280 = vunpack.c.l.b16 %v243
    %v281 = vunpack.c.l.b16 %v244
    %v282 = vunpack.c.l.b16 %v245
    %v283 = vunpack.c.l.b16 %v246
    %v284 = vunpack.c.l.b16 %v247
    %v285 = vunpack.c.l.b16 %v248
    %v286 = vunpack.c.l.b16 %v249
    %v287 = vunpack.c.l.b16 %v250
    %v288 = vunpack.c.l.b16 %v251
    %v289 = vunpack.c.l.b16 %v252
    %v290 = vpack.c.b16 %v275, %v274
    %v291 = vpack.c.b16 %v277, %v276
    %v292 = vpack.c.b16 %v279, %v278
    %v293 = vpack.c.b16 %v281, %v280
    %v294 = vpack.c.b16 %v283, %v282
    %v295 = vpack.c.b16 %v285, %v284
    %v296 = vpack.c.b16 %v287, %v286
    %v297 = vpack.c.b16 %v289, %v288
    %306 = vmatprep.subr.bf16.mxu0 0
    %307 = vmatpush1.bf16.msra.mxu0 %v290
    %308 = vmatprep.subr.bf16.mxu0 0
    %309 = vmatpush1.bf16.msra.mxu0 %v291
    %310 = vmatprep.subr.bf16.mxu0 0
    %311 = vmatpush1.bf16.msra.mxu0 %v292
    %312 = vmatprep.subr.bf16.mxu0 0
    %313 = vmatpush1.bf16.msra.mxu0 %v293
    %314 = vmatprep.subr.bf16.mxu0 0
    %315 = vmatpush1.bf16.msra.mxu0 %v294
    %316 = vmatprep.subr.bf16.mxu0 0
    %317 = vmatpush1.bf16.msra.mxu0 %v295
    %318 = vmatprep.subr.bf16.mxu0 0
    %319 = vmatpush1.bf16.msra.mxu0 %v296
    %320 = vmatprep.subr.bf16.mxu0 0
    %321 = vmatpush1.bf16.msra.mxu0 %v297
    %322 = vmatprep.subr.bf16.mxu0 0
    %323 = vmatpush1.bf16.msra.mxu0 0
    %324 = vmatprep.subr.bf16.mxu0 0
    %325 = vmatpush1.bf16.msra.mxu0 0
    %326 = vmatprep.subr.bf16.mxu0 0
    %327 = vmatpush1.bf16.msra.mxu0 0
    %328 = vmatprep.subr.bf16.mxu0 0
    %329 = vmatpush1.bf16.msra.mxu0 0
    %330 = vmatprep.subr.bf16.mxu0 0
    %331 = vmatpush1.bf16.msra.mxu0 0
    %332 = vmatprep.subr.bf16.mxu0 0
    %333 = vmatpush1.bf16.msra.mxu0 0
    %334 = vmatprep.subr.bf16.mxu0 0
    %335 = vmatpush1.bf16.msra.mxu0 0
    %336 = vmatprep.subr.bf16.mxu0 0
    %337 = vmatpush1.bf16.msra.mxu0 0
    %338 = vmatprep.mubr.bf16.mxu0 0
    %339 = vmatmul.mubr.bf16.gmra.mrb[0].mxu0 %v235
    %v340 = vpop.f32.mrb[0].mxu0
    %v341 = vadd.f32 %v257, %v340
    %v342 = vpop.f32.mrb[0].mxu0
    %v343 = vpop.f32.mrb[0].mxu0
    %v344 = vpop.f32.mrb[0].mxu0
    %345 = vdwg.mxu0
    %vm346 = vcmp.gt.f32.partialorder %v341, 0.0
    %v347 = vmul.f32 %v341, 0.01
    %v348 = vsel %vm346, %v341, %v347
    %v349 = vpack.c.bf16 %v348, %v348
    %s350 = scalar_lea.vmem [#allocation7], 128
    %v351 = vld [vmem:[%s350] sm:$0xf]
    %v352 = vld [vmem:[%s350 + $0x4] sm:$0xf]
    %v353 = vld [vmem:[%s350 + $0x8] sm:$0xf]
    %v354 = vld [vmem:[%s350 + $0xc] sm:$0xf]
    %v355 = vld [vmem:[%s350 + $0x10] sm:$0xf]
    %v356 = vld [vmem:[%s350 + $0x14] sm:$0xf]
    %v357 = vld [vmem:[%s350 + $0x18] sm:$0xf]
    %v358 = vld [vmem:[%s350 + $0x1c] sm:$0xf]
    %v359 = vld [vmem:[%s350 + $0x20] sm:$0xf]
    %v360 = vld [vmem:[%s350 + $0x24] sm:$0xf]
    %v361 = vld [vmem:[%s350 + $0x28] sm:$0xf]
    %v362 = vld [vmem:[%s350 + $0x2c] sm:$0xf]
    %v363 = vld [vmem:[%s350 + $0x30] sm:$0xf]
    %v364 = vld [vmem:[%s350 + $0x34] sm:$0xf]
    %v365 = vld [vmem:[%s350 + $0x38] sm:$0xf]
    %v366 = vld [vmem:[%s350 + $0x3c] sm:$0xf]
    %v367 = vld [vmem:[%s2 + $0x2] sm:$0x1]
    %v368 = vlaneseq
    %v369 = vshrl.u32 %v368, 7
    %v370 = vsub.s32 0, %v369
    %v371 = vrot.slane %v367, %v370
    %v388 = vunpack.c.l.b16 %v351
    %v389 = vunpack.c.l.b16 %v352
    %v390 = vunpack.c.l.b16 %v353
    %v391 = vunpack.c.l.b16 %v354
    %v392 = vunpack.c.l.b16 %v355
    %v393 = vunpack.c.l.b16 %v356
    %v394 = vunpack.c.l.b16 %v357
    %v395 = vunpack.c.l.b16 %v358
    %v396 = vunpack.c.l.b16 %v359
    %v397 = vunpack.c.l.b16 %v360
    %v398 = vunpack.c.l.b16 %v361
    %v399 = vunpack.c.l.b16 %v362
    %v400 = vunpack.c.l.b16 %v363
    %v401 = vunpack.c.l.b16 %v364
    %v402 = vunpack.c.l.b16 %v365
    %v403 = vunpack.c.l.b16 %v366
    %v404 = vpack.c.b16 %v389, %v388
    %v405 = vpack.c.b16 %v391, %v390
    %v406 = vpack.c.b16 %v393, %v392
    %v407 = vpack.c.b16 %v395, %v394
    %v408 = vpack.c.b16 %v397, %v396
    %v409 = vpack.c.b16 %v399, %v398
    %v410 = vpack.c.b16 %v401, %v400
    %v411 = vpack.c.b16 %v403, %v402
    %420 = vmatprep.subr.bf16.mxu0 0
    %421 = vmatpush1.bf16.msra.mxu0 %v404
    %422 = vmatprep.subr.bf16.mxu0 0
    %423 = vmatpush1.bf16.msra.mxu0 %v405
    %424 = vmatprep.subr.bf16.mxu0 0
    %425 = vmatpush1.bf16.msra.mxu0 %v406
    %426 = vmatprep.subr.bf16.mxu0 0
    %427 = vmatpush1.bf16.msra.mxu0 %v407
    %428 = vmatprep.subr.bf16.mxu0 0
    %429 = vmatpush1.bf16.msra.mxu0 %v408
    %430 = vmatprep.subr.bf16.mxu0 0
    %431 = vmatpush1.bf16.msra.mxu0 %v409
    %432 = vmatprep.subr.bf16.mxu0 0
    %433 = vmatpush1.bf16.msra.mxu0 %v410
    %434 = vmatprep.subr.bf16.mxu0 0
    %435 = vmatpush1.bf16.msra.mxu0 %v411
    %436 = vmatprep.subr.bf16.mxu0 0
    %437 = vmatpush1.bf16.msra.mxu0 0
    %438 = vmatprep.subr.bf16.mxu0 0
    %439 = vmatpush1.bf16.msra.mxu0 0
    %440 = vmatprep.subr.bf16.mxu0 0
    %441 = vmatpush1.bf16.msra.mxu0 0
    %442 = vmatprep.subr.bf16.mxu0 0
    %443 = vmatpush1.bf16.msra.mxu0 0
    %444 = vmatprep.subr.bf16.mxu0 0
    %445 = vmatpush1.bf16.msra.mxu0 0
    %446 = vmatprep.subr.bf16.mxu0 0
    %447 = vmatpush1.bf16.msra.mxu0 0
    %448 = vmatprep.subr.bf16.mxu0 0
    %449 = vmatpush1.bf16.msra.mxu0 0
    %450 = vmatprep.subr.bf16.mxu0 0
    %451 = vmatpush1.bf16.msra.mxu0 0
    %452 = vmatprep.mubr.bf16.mxu0 0
    %453 = vmatmul.mubr.bf16.gmra.mrb[0].mxu0 %v349
    %v454 = vpop.f32.mrb[0].mxu0
    %v455 = vadd.f32 %v371, %v454
    %v456 = vpop.f32.mrb[0].mxu0
    %v457 = vpop.f32.mrb[0].mxu0
    %v458 = vpop.f32.mrb[0].mxu0
    %459 = vdwg.mxu0
    %vm460 = vcmp.gt.f32.partialorder %v455, 0.0
    %v461 = vmul.f32 %v455, 0.01
    %v462 = vsel %vm460, %v455, %v461
    %v463 = vpack.c.bf16 %v462, %v462
    %s464 = scalar_lea.vmem [#allocation7], 192
    %v465 = vld [vmem:[%s464] sm:$0xf]
    %v466 = vld [vmem:[%s464 + $0x4] sm:$0xf]
    %v467 = vld [vmem:[%s464 + $0x8] sm:$0xf]
    %v468 = vld [vmem:[%s464 + $0xc] sm:$0xf]
    %v469 = vld [vmem:[%s464 + $0x10] sm:$0xf]
    %v470 = vld [vmem:[%s464 + $0x14] sm:$0xf]
    %v471 = vld [vmem:[%s464 + $0x18] sm:$0xf]
    %v472 = vld [vmem:[%s464 + $0x1c] sm:$0xf]
    %v473 = vld [vmem:[%s464 + $0x20] sm:$0xf]
    %v474 = vld [vmem:[%s464 + $0x24] sm:$0xf]
    %v475 = vld [vmem:[%s464 + $0x28] sm:$0xf]
    %v476 = vld [vmem:[%s464 + $0x2c] sm:$0xf]
    %v477 = vld [vmem:[%s464 + $0x30] sm:$0xf]
    %v478 = vld [vmem:[%s464 + $0x34] sm:$0xf]
    %v479 = vld [vmem:[%s464 + $0x38] sm:$0xf]
    %v480 = vld [vmem:[%s464 + $0x3c] sm:$0xf]
    %v481 = vld [vmem:[%s2 + $0x3] sm:$0x1]
    %v482 = vlaneseq
    %v483 = vshrl.u32 %v482, 7
    %v484 = vsub.s32 0, %v483
    %v485 = vrot.slane %v481, %v484
    %v502 = vunpack.c.l.b16 %v465
    %v503 = vunpack.c.l.b16 %v466
    %v504 = vunpack.c.l.b16 %v467
    %v505 = vunpack.c.l.b16 %v468
    %v506 = vunpack.c.l.b16 %v469
    %v507 = vunpack.c.l.b16 %v470
    %v508 = vunpack.c.l.b16 %v471
    %v509 = vunpack.c.l.b16 %v472
    %v510 = vunpack.c.l.b16 %v473
    %v511 = vunpack.c.l.b16 %v474
    %v512 = vunpack.c.l.b16 %v475
    %v513 = vunpack.c.l.b16 %v476
    %v514 = vunpack.c.l.b16 %v477
    %v515 = vunpack.c.l.b16 %v478
    %v516 = vunpack.c.l.b16 %v479
    %v517 = vunpack.c.l.b16 %v480
    %v518 = vpack.c.b16 %v503, %v502
    %v519 = vpack.c.b16 %v505, %v504
    %v520 = vpack.c.b16 %v507, %v506
    %v521 = vpack.c.b16 %v509, %v508
    %v522 = vpack.c.b16 %v511, %v510
    %v523 = vpack.c.b16 %v513, %v512
    %v524 = vpack.c.b16 %v515, %v514
    %v525 = vpack.c.b16 %v517, %v516
    %534 = vmatprep.subr.bf16.mxu0 0
    %535 = vmatpush1.bf16.msra.mxu0 %v518
    %536 = vmatprep.subr.bf16.mxu0 0
    %537 = vmatpush1.bf16.msra.mxu0 %v519
    %538 = vmatprep.subr.bf16.mxu0 0
    %539 = vmatpush1.bf16.msra.mxu0 %v520
    %540 = vmatprep.subr.bf16.mxu0 0
    %541 = vmatpush1.bf16.msra.mxu0 %v521
    %542 = vmatprep.subr.bf16.mxu0 0
    %543 = vmatpush1.bf16.msra.mxu0 %v522
    %544 = vmatprep.subr.bf16.mxu0 0
    %545 = vmatpush1.bf16.msra.mxu0 %v523
    %546 = vmatprep.subr.bf16.mxu0 0
    %547 = vmatpush1.bf16.msra.mxu0 %v524
    %548 = vmatprep.subr.bf16.mxu0 0
    %549 = vmatpush1.bf16.msra.mxu0 %v525
    %550 = vmatprep.subr.bf16.mxu0 0
    %551 = vmatpush1.bf16.msra.mxu0 0
    %552 = vmatprep.subr.bf16.mxu0 0
    %553 = vmatpush1.bf16.msra.mxu0 0
    %554 = vmatprep.subr.bf16.mxu0 0
    %555 = vmatpush1.bf16.msra.mxu0 0
    %556 = vmatprep.subr.bf16.mxu0 0
    %557 = vmatpush1.bf16.msra.mxu0 0
    %558 = vmatprep.subr.bf16.mxu0 0
    %559 = vmatpush1.bf16.msra.mxu0 0
    %560 = vmatprep.subr.bf16.mxu0 0
    %561 = vmatpush1.bf16.msra.mxu0 0
    %562 = vmatprep.subr.bf16.mxu0 0
    %563 = vmatpush1.bf16.msra.mxu0 0
    %564 = vmatprep.subr.bf16.mxu0 0
    %565 = vmatpush1.bf16.msra.mxu0 0
    %566 = vmatprep.mubr.bf16.mxu0 0
    %567 = vmatmul.mubr.bf16.gmra.mrb[0].mxu0 %v463
    %v568 = vpop.f32.mrb[0].mxu0
    %v569 = vadd.f32 %v485, %v568
    %v570 = vpop.f32.mrb[0].mxu0
    %v571 = vpop.f32.mrb[0].mxu0
    %v572 = vpop.f32.mrb[0].mxu0
    %573 = vdwg.mxu0
    %vm574 = vcmp.gt.f32.partialorder %v569, 0.0
    %v575 = vmul.f32 %v569, 0.01
    %v576 = vsel %vm574, %v569, %v575
    %577 = vst [vmem:[#allocation8] sm:$0xff] %v576
    // Predicated region
    $region30: #{tpu_custom_call.1} parent=1 // pred_check
      _
    $region31: #{tpu_custom_call.1} parent=1 // pred_check_branch
      %579 = sbr.rel (0) target = $region33
    $region32: #{tpu_custom_call.1} parent=1 // pred_region
      %s581 = ssub.s32 128, 128
      %582 = vsyncadd [#allocation4], %s581
      %s584 = sshll.u32 [#allocation8], 4
      %s585 = int_to_ptr.vmem [resolvable:$true] %s584
      %587 = dma.vmem_to_hbm [thread:$0]  %s585, 128, %s4, [#allocation4]
    $region33: #{tpu_custom_call.1} parent=1 // pred_fallthru
      _
    // Predicated region
    $region34: #{tpu_custom_call.1} parent=1 // pred_check
      _
    $region35: #{tpu_custom_call.1} parent=1 // pred_check_branch
      %589 = sbr.rel (0) target = $region37
    $region36: #{tpu_custom_call.1} parent=1 // pred_region
      %590 = dma.done [#allocation4], 128
    $region37: #{tpu_custom_call.1} parent=1 // pred_fallthru
      _
    %591 = vsyncpa [#allocation3], 1
    %592 = vsyncpa [#allocation6], 1
    %593 = vsyncpa [#allocation4], 1

</llo_original>
